<compile_context>
chip_gen: v7x
topology: tpu7x:2x2x1
jax: 0.10.0
libtpu: 0.0.40
codegen_flags: <defaults>
</compile_context>

<pallas_src>
import functools

import jax
import jax.numpy as jnp
from jax.experimental import pallas as pl
from jax.experimental.pallas import tpu as pltpu


def _make_bn_kernel(eps: float, momentum: float, n: int):
    # torch.Tensor.var(dim=0) is unbiased (N-1); for N == 1 it returns NaN.
    inv_nm1 = 1.0 / (n - 1) if n > 1 else float("nan")

    def bn_kernel(x_ref, p_ref, o_ref, stats_ref):
        # Native-dtype tile DMA'd from HBM; cast to f32 on the VPU (stable
        # accumulation; v5e has no bf16 VPU path anyway).
        x = x_ref[...].astype(jnp.float32)                  # (N, TF) f32

        w = p_ref[0:1, :]                                   # (1, TF) f32
        b = p_ref[1:2, :]
        rm = p_ref[2:3, :]
        rv = p_ref[3:4, :]

        # Batch statistics over dim 0 (the sublane axis).  The centered term
        # is fused into the reduction and recomputed on the normalize line so
        # no extra (N, TF) f32 buffer needs to stay live (more VMEM for the
        # actual tiles).
        mean = jnp.mean(x, axis=0, keepdims=True)           # (1, TF)
        d = x - mean
        var = jnp.sum(d * d, axis=0, keepdims=True) * jnp.float32(inv_nm1)

        # Running-stat EMA, written as a stacked (2, TF) row block.
        stats_ref[0:1, :] = (1.0 - momentum) * rm + momentum * mean
        stats_ref[1:2, :] = (1.0 - momentum) * rv + momentum * var

        inv_std = jax.lax.rsqrt(var + jnp.float32(eps))
        o_ref[...] = (((x - mean) * inv_std) * w + b).astype(o_ref.dtype)

    return bn_kernel


def _physical_vmem_bytes() -> int:
    """Per-TensorCore VMEM capacity; conservative (v7x, 64 MiB) if unknown."""
    default = 64 * 1024 * 1024
    try:
        info = pltpu.get_tpu_info()
        cap = getattr(info, "vmem_capacity_bytes", None)
        if cap:
            return int(cap)
    except Exception:
        pass
    return default


def _choose_tile_and_vmem_limit(n: int, f: int, itemsize: int):
    """Largest lane-dense (multiple-of-128) feature tile whose full pipeline
    footprint fits a generation-appropriate scoped-VMEM budget."""
    phys = _physical_vmem_bytes()
    # v5e/v6e (128 MiB physical): ~96 MiB scoped; v7x (64 MiB): ~48 MiB.
    vmem_limit = max(32 << 20, min(phys - (8 << 20), int(phys * 0.75)))

    # Bytes per feature lane of one grid step:
    #   x: 2x double-buffered native + f32 working copy + ~1 f32 transient
    #   y: 2x double-buffered native
    #   params (4, TF) f32 + stats (2, TF) f32, double-buffered  (+48)
    per_lane = n * (4 * itemsize + 12) + 48

    budget = int(vmem_limit * 0.85)
    tf = (budget // per_lane) // 128 * 128
    fp = pl.cdiv(f, 128) * 128            # no point exceeding (padded) F
    tf = max(128, min(tf, fp, 16384))     # cap keeps several steps for huge F

    est = per_lane * tf + (1 << 20)
    if est > vmem_limit:
        # Very large N: even a 128-lane tile misses the budget.  Raise the
        # scoped limit toward the physical ceiling (may spill) rather than
        # failing outright.
        # TODO(synk): add a batch-chunked two-pass reduction (extra grid axis
        # over batch chunks with scratch sum/sumsq accumulators) for huge N.
        vmem_limit = min(int(est * 1.2), phys - (4 << 20))
    return tf, int(vmem_limit)


def batch_norm_forward(x, weight, bias, running_mean, running_var,
                       eps: float = 1e-5, momentum: float = 0.1):
    """Training-mode BatchNorm forward. x: (N, F). Returns (y, new_rm, new_rv)."""
    n, f = x.shape
    itemsize = jnp.dtype(x.dtype).itemsize

    # Per-feature params stacked into a single (4, F) f32 slab: one params DMA
    # per grid step instead of four.  Rows: weight, bias, run_mean, run_var.
    params = jnp.stack(
        [weight.astype(jnp.float32),
         bias.astype(jnp.float32),
         running_mean.astype(jnp.float32),
         running_var.astype(jnp.float32)], axis=0)          # (4, F)

    tf, vmem_limit = _choose_tile_and_vmem_limit(n, f, itemsize)
    grid = (pl.cdiv(f, tf),)                                 # partial last tile OK

    kernel = _make_bn_kernel(eps, momentum, n)

    mat_spec = pl.BlockSpec((n, tf), lambda j: (0, j))       # x / y tiles
    par_spec = pl.BlockSpec((4, tf), lambda j: (0, j))       # stacked params
    sta_spec = pl.BlockSpec((2, tf), lambda j: (0, j))       # stacked new stats

    cost = pl.CostEstimate(
        flops=8 * n * f,
        transcendentals=f,
        bytes_accessed=2 * n * f * itemsize + 4 * f * 4 + 2 * f * 4,
    )

    y, stats = pl.pallas_call(
        kernel,
        grid=grid,
        out_shape=(
            jax.ShapeDtypeStruct((n, f), x.dtype),           # y, input dtype
            jax.ShapeDtypeStruct((2, f), jnp.float32),       # [new_rm; new_rv]
        ),
        in_specs=[mat_spec, par_spec],
        out_specs=(mat_spec, sta_spec),
        compiler_params=pltpu.CompilerParams(
            dimension_semantics=("parallel",),               # shard tiles across TCs
            vmem_limit_bytes=vmem_limit,
        ),
        cost_estimate=cost,
    )(x, params)

    return y, stats[0], stats[1]


if __name__ == "__main__":
    key = jax.random.PRNGKey(0)
    N, F = 8, 32  # batch=8, num_features=32

    x = jax.random.normal(key, (N, F), dtype=jnp.float32)

    # Deterministic parameter init matching the module's __init__.
    weight = jnp.ones((F,), dtype=jnp.float32)
    bias = jnp.zeros((F,), dtype=jnp.float32)
    running_mean = jnp.zeros((F,), dtype=jnp.float32)
    running_var = jnp.ones((F,), dtype=jnp.float32)

    bn = jax.jit(functools.partial(batch_norm_forward, eps=1e-5, momentum=0.1))
    y, new_rm, new_rv = bn(x, weight, bias, running_mean, running_var)
    jax.block_until_ready((y, new_rm, new_rv))

    # Pure-JAX reference with the module's semantics (unbiased var everywhere).
    mean = jnp.mean(x, axis=0)
    var = jnp.var(x, axis=0, ddof=1)
    y_ref = (x - mean) / jnp.sqrt(var + 1e-5) * weight + bias

    assert jnp.allclose(y, y_ref, atol=1e-5, rtol=1e-5)
    assert jnp.allclose(new_rm, 0.9 * running_mean + 0.1 * mean, atol=1e-6)
    assert jnp.allclose(new_rv, 0.9 * running_var + 0.1 * var, atol=1e-6)

    print("KERNEL_OK")
</pallas_src>

<mosaic_0001>
module attributes {stable_mosaic.version = 11 : i64} {
  func.func @bn_kernel(%arg0: i32, %arg1: memref<8x128xf32, #tpu.memory_space<vmem>>, %arg2: memref<4x128xf32, #tpu.memory_space<vmem>>, %arg3: memref<8x128xf32, #tpu.memory_space<vmem>>, %arg4: memref<2x128xf32, #tpu.memory_space<vmem>>) attributes {dimension_semantics = [#tpu.dimension_semantics<parallel>], iteration_bounds = array<i64: 1>, scalar_prefetch = 0 : i64, scratch_operands = 0 : i64, tpu.core_type = #tpu.core_type<tc>, window_params = [{transform_indices = @transform_0, window_bounds = array<i64: 8, 128>}, {transform_indices = @transform_1, window_bounds = array<i64: 4, 128>}, {transform_indices = @transform_2, window_bounds = array<i64: 8, 128>}, {transform_indices = @transform_3, window_bounds = array<i64: 2, 128>}]} {
    %c0 = arith.constant 0 : index
    %c0_0 = arith.constant 0 : index
    %0 = vector.load %arg1[%c0, %c0_0] : memref<8x128xf32, #tpu.memory_space<vmem>>, vector<8x128xf32>
    %c0_1 = arith.constant 0 : index
    %c0_2 = arith.constant 0 : index
    %1 = vector.load %arg2[%c0_1, %c0_2] : memref<4x128xf32, #tpu.memory_space<vmem>>, vector<1x128xf32>
    %c1 = arith.constant 1 : index
    %c0_3 = arith.constant 0 : index
    %2 = vector.load %arg2[%c1, %c0_3] : memref<4x128xf32, #tpu.memory_space<vmem>>, vector<1x128xf32>
    %c2 = arith.constant 2 : index
    %c0_4 = arith.constant 0 : index
    %3 = vector.load %arg2[%c2, %c0_4] : memref<4x128xf32, #tpu.memory_space<vmem>>, vector<1x128xf32>
    %c3 = arith.constant 3 : index
    %c0_5 = arith.constant 0 : index
    %4 = vector.load %arg2[%c3, %c0_5] : memref<4x128xf32, #tpu.memory_space<vmem>>, vector<1x128xf32>
    %cst = arith.constant dense<0.000000e+00> : vector<128xf32>
    %5 = vector.multi_reduction <add>, %0, %cst [0] : vector<8x128xf32> to vector<128xf32>
    %6 = vector.shape_cast %5 : vector<128xf32> to vector<1x128xf32>
    %cst_6 = arith.constant 8.000000e+00 : f32
    %7 = vector.broadcast %cst_6 : f32 to vector<1x128xf32>
    %8 = arith.divf %6, %7 : vector<1x128xf32>
    %9 = vector.broadcast %8 : vector<1x128xf32> to vector<8x128xf32>
    %10 = arith.subf %0, %9 : vector<8x128xf32>
    %11 = arith.mulf %10, %10 : vector<8x128xf32>
    %cst_7 = arith.constant dense<0.000000e+00> : vector<128xf32>
    %12 = vector.multi_reduction <add>, %11, %cst_7 [0] : vector<8x128xf32> to vector<128xf32>
    %13 = vector.shape_cast %12 : vector<128xf32> to vector<1x128xf32>
    %cst_8 = arith.constant 0.142857149 : f32
    %14 = vector.broadcast %cst_8 : f32 to vector<1x128xf32>
    %15 = arith.mulf %13, %14 : vector<1x128xf32>
    %cst_9 = arith.constant 0.899999976 : f32
    %16 = vector.broadcast %cst_9 : f32 to vector<1x128xf32>
    %17 = arith.mulf %16, %3 : vector<1x128xf32>
    %cst_10 = arith.constant 1.000000e-01 : f32
    %18 = vector.broadcast %cst_10 : f32 to vector<1x128xf32>
    %19 = arith.mulf %18, %8 : vector<1x128xf32>
    %20 = arith.addf %17, %19 : vector<1x128xf32>
    %c0_11 = arith.constant 0 : index
    %c0_12 = arith.constant 0 : index
    %21 = vector.load %arg4[%c0_11, %c0_12] : memref<2x128xf32, #tpu.memory_space<vmem>>, vector<1x128xf32>
    tpu.vector_store %arg4[%c0_11, %c0_12], %20 {strides = array<i32>} : memref<2x128xf32, #tpu.memory_space<vmem>>, vector<1x128xf32>,
    %cst_13 = arith.constant 0.899999976 : f32
    %22 = vector.broadcast %cst_13 : f32 to vector<1x128xf32>
    %23 = arith.mulf %22, %4 : vector<1x128xf32>
    %cst_14 = arith.constant 1.000000e-01 : f32
    %24 = vector.broadcast %cst_14 : f32 to vector<1x128xf32>
    %25 = arith.mulf %24, %15 : vector<1x128xf32>
    %26 = arith.addf %23, %25 : vector<1x128xf32>
    %c1_15 = arith.constant 1 : index
    %c0_16 = arith.constant 0 : index
    %27 = vector.load %arg4[%c1_15, %c0_16] : memref<2x128xf32, #tpu.memory_space<vmem>>, vector<1x128xf32>
    tpu.vector_store %arg4[%c1_15, %c0_16], %26 {strides = array<i32>} : memref<2x128xf32, #tpu.memory_space<vmem>>, vector<1x128xf32>,
    %cst_17 = arith.constant 9.99999974E-6 : f32
    %28 = vector.broadcast %cst_17 : f32 to vector<1x128xf32>
    %29 = arith.addf %15, %28 : vector<1x128xf32>
    %30 = math.rsqrt %29 : vector<1x128xf32>
    %31 = vector.broadcast %8 : vector<1x128xf32> to vector<8x128xf32>
    %32 = arith.subf %0, %31 : vector<8x128xf32>
    %33 = vector.broadcast %30 : vector<1x128xf32> to vector<8x128xf32>
    %34 = arith.mulf %32, %33 : vector<8x128xf32>
    %35 = vector.broadcast %1 : vector<1x128xf32> to vector<8x128xf32>
    %36 = arith.mulf %34, %35 : vector<8x128xf32>
    %37 = vector.broadcast %2 : vector<1x128xf32> to vector<8x128xf32>
    %38 = arith.addf %36, %37 : vector<8x128xf32>
    %c0_18 = arith.constant 0 : index
    %c0_19 = arith.constant 0 : index
    %39 = vector.load %arg3[%c0_18, %c0_19] : memref<8x128xf32, #tpu.memory_space<vmem>>, vector<8x128xf32>
    tpu.vector_store %arg3[%c0_18, %c0_19], %38 {strides = array<i32>} : memref<8x128xf32, #tpu.memory_space<vmem>>, vector<8x128xf32>,
    return
  }
  func.func @transform_0(%arg0: i32) -> (i32, i32) {
    %c0_i32 = arith.constant 0 : i32
    %c0_i32_0 = arith.constant 0 : i32
    return %c0_i32, %arg0 : i32, i32
  }
  func.func @transform_1(%arg0: i32) -> (i32, i32) {
    %c0_i32 = arith.constant 0 : i32
    %c0_i32_0 = arith.constant 0 : i32
    return %c0_i32, %arg0 : i32, i32
  }
  func.func @transform_2(%arg0: i32) -> (i32, i32) {
    %c0_i32 = arith.constant 0 : i32
    %c0_i32_0 = arith.constant 0 : i32
    return %c0_i32, %arg0 : i32, i32
  }
  func.func @transform_3(%arg0: i32) -> (i32, i32) {
    %c0_i32 = arith.constant 0 : i32
    %c0_i32_0 = arith.constant 0 : i32
    return %c0_i32, %arg0 : i32, i32
  }
}

</mosaic_0001>

<llo_original>
// kernel: batch_norm_forward.1
$region0: #{batch_norm_forward.1}
  #allocation0 [shape = 'u32[]', space=smem, size = 0x4, offset = 0x4, fixed_abs, tag = 'smem constant byte address 0x4 - core index']
  #allocation1 [shape = 'u32[144,128]{1,0:T(1,128)}', space=vmem, size = 0x12000, scoped, tag = 'internal scratch']
  %s0 = inlined_call_operand.vmem [shape: f32[8,32], index: 0, kind: input, shape index: {}]
  %s1 = inlined_call_operand.vmem [shape: f32[4,32], index: 1, kind: input, shape index: {}]
  %s2 = inlined_call_operand.hbm [shape: f32[8,32], index: 2, kind: output, shape index: {0}]
  %s3 = inlined_call_operand.vmem [shape: f32[2,32], index: 3, kind: output, shape index: {1}]
  %4 = xla_tuple %s2, %s3
  %s5 = sld [smem:[#allocation0]]
  $region26: #{batch_norm_forward.1} parent=0
    _
  %s7 = ssub.s32 1, %s5
  %s8 = scalar_select 0, %s7, %s5
  $region1: #{batch_norm_forward.1} parent=0
    #allocation2 [shape = 'u8[4096]{0}', space=vmem, size = 0x1000, scoped, tag = 'output window, operand 0, single buffered']
    #allocation3 [shape = 's32[1]{0}', space=sflag, size = 0x4, scoped, tag = 'scoped memory for batch_norm_forward.1']
    %9 = vsyncpa [#allocation3], 0
    // Predicated region
    $region2: #{batch_norm_forward.1} parent=1 // pred_check
      _
    $region3: #{batch_norm_forward.1} parent=1 // pred_check_branch
      %11 = sbr.rel (0) target = $region5
    $region4: #{batch_norm_forward.1} parent=1 // pred_region
      _
    $region5: #{batch_norm_forward.1} parent=1 // pred_fallthru
      _
    // Predicated region
    $region6: #{batch_norm_forward.1} parent=1 // pred_check
      _
    $region7: #{batch_norm_forward.1} parent=1 // pred_check_branch
      %13 = sbr.rel (0) target = $region9
    $region8: #{batch_norm_forward.1} parent=1 // pred_region
      _
    $region9: #{batch_norm_forward.1} parent=1 // pred_fallthru
      _
    %v14 = vld [vmem:[%s0] sm:$0xff]
    %v15 = vld [vmem:[%s1] sm:$0x1]
    %v16 = vld [vmem:[%s1 + $0x1] sm:$0x1]
    %v17 = vld [vmem:[%s1 + $0x2] sm:$0x1]
    %v18 = vld [vmem:[%s1 + $0x3] sm:$0x1]
    %v19 = vrot.slane %v14, 4
    %v20 = vadd.f32 %v14, %v19
    %v21 = vrot.slane %v20, 2
    %v22 = vadd.f32 %v20, %v21
    %v23 = vrot.slane %v22, 1
    %v24 = vadd.f32 %v22, %v23
    %v25 = vrcp.pop 8.0
    %v26 = vmul.f32 %v24, %v25
    %v27 = vsub.f32 %v14, %v26
    %v28 = vmul.f32 %v27, %v27
    %v29 = vrot.slane %v28, 4
    %v30 = vadd.f32 %v28, %v29
    %v31 = vrot.slane %v30, 2
    %v32 = vadd.f32 %v30, %v31
    %v33 = vrot.slane %v32, 1
    %v34 = vadd.f32 %v32, %v33
    %v35 = vmul.f32 %v34, 0.14285715
    %v36 = vmul.f32 %v17, 0.9
    %v37 = vmul.f32 %v26, 0.1
    %v38 = vadd.f32 %v36, %v37
    %39 = vst [vmem:[%s3] sm:$0x1] %v38
    %v40 = vmul.f32 %v18, 0.9
    %v41 = vmul.f32 %v35, 0.1
    %v42 = vadd.f32 %v40, %v41
    %43 = vst [vmem:[%s3 + $0x1] sm:$0x1] %v42
    %v44 = vadd.f32 %v35, 1e-05
    %v45 = vrsqrt.pop %v44
    %v46 = vmul.f32 %v27, %v45
    %v47 = vlaneseq
    %v48 = vshrl.u32 %v47, 7
    %v49 = vsub.s32 0, %v48
    %v50 = vrot.slane %v15, %v49
    %v51 = vmul.f32 %v46, %v50
    %v52 = vlaneseq
    %v53 = vshrl.u32 %v52, 7
    %v54 = vsub.s32 0, %v53
    %v55 = vrot.slane %v16, %v54
    %v56 = vadd.f32 %v51, %v55
    %57 = vst [vmem:[#allocation2] sm:$0xff] %v56
    // Predicated region
    $region10: #{batch_norm_forward.1} parent=1 // pred_check
      _
    $region11: #{batch_norm_forward.1} parent=1 // pred_check_branch
      %59 = sbr.rel (0) target = $region13
    $region12: #{batch_norm_forward.1} parent=1 // pred_region
      %s61 = ssub.s32 128, 128
      %62 = vsyncadd [#allocation3], %s61
      %s64 = sshll.u32 [#allocation2], 4
      %s65 = int_to_ptr.vmem [resolvable:$true] %s64
      %67 = dma.vmem_to_hbm [thread:$0]  %s65, 128, %s2, [#allocation3]
    $region13: #{batch_norm_forward.1} parent=1 // pred_fallthru
      _
    // Predicated region
    $region14: #{batch_norm_forward.1} parent=1 // pred_check
      _
    $region15: #{batch_norm_forward.1} parent=1 // pred_check_branch
      %69 = sbr.rel (0) target = $region17
    $region16: #{batch_norm_forward.1} parent=1 // pred_region
      _
    $region17: #{batch_norm_forward.1} parent=1 // pred_fallthru
      _
    // Predicated region
    $region18: #{batch_norm_forward.1} parent=1 // pred_check
      _
    $region19: #{batch_norm_forward.1} parent=1 // pred_check_branch
      %71 = sbr.rel (0) target = $region21
    $region20: #{batch_norm_forward.1} parent=1 // pred_region
      %72 = dma.done [#allocation3], 128
    $region21: #{batch_norm_forward.1} parent=1 // pred_fallthru
      _
    // Predicated region
    $region22: #{batch_norm_forward.1} parent=1 // pred_check
      _
    $region23: #{batch_norm_forward.1} parent=1 // pred_check_branch
      %74 = sbr.rel (0) target = $region25
    $region24: #{batch_norm_forward.1} parent=1 // pred_region
      _
    $region25: #{batch_norm_forward.1} parent=1 // pred_fallthru
      _
    %75 = vsyncpa [#allocation3], 1

</llo_original>
